<compile_context>
chip_gen: v5e
topology: v5e:2x2
jax: 0.10.0
libtpu: 0.0.40
codegen_flags: <defaults>
</compile_context>

<pallas_src>
import functools

import jax
import jax.numpy as jnp
from jax.experimental import pallas as pl
from jax.experimental.pallas import tpu as pltpu


# ---------------------------------------------------------------------------
# Kernels
# ---------------------------------------------------------------------------
def _node_noise_tpu_kernel(seed_ref, x_ref, o_ref, *, scale):
    """In-kernel hardware PRNG version (TPU only)."""
    # Per-block seeding: the body re-runs for every grid step, so mix the
    # block index into the seed to avoid identical noise on every tile.
    pltpu.prng_seed(seed_ref[0], pl.program_id(0))

    bits = pltpu.prng_random_bits(x_ref.shape)
    if bits.dtype != jnp.uint32:            # trace-time guard, no runtime cost
        bits = pltpu.bitcast(bits, jnp.uint32)

    # Mantissa trick: uniform in [1, 2) -> subtract 1 -> u in [0, 1 - 2^-23].
    mant = (bits >> jnp.uint32(9)) | jnp.uint32(0x3F800000)
    u = pltpu.bitcast(mant, jnp.float32) - 1.0
    # Upper bound is already < 1, only the lower bound needs clamping.
    u = jnp.maximum(u, 1e-7)

    # Logistic(0, scale) == difference of two iid Gumbel(loc, scale).
    noise = jnp.log(u) - jnp.log(1.0 - u)
    if scale != 1.0:
        noise = noise * scale

    o_ref[...] = (x_ref[...] + noise).astype(o_ref.dtype)


def _node_noise_portable_kernel(x_ref, u_ref, o_ref, *, scale):
    """Fallback: uniforms are generated outside the kernel (CPU / interpret)."""
    u = u_ref[...]
    noise = jnp.log(u) - jnp.log(1.0 - u)
    if scale != 1.0:
        noise = noise * scale
    o_ref[...] = (x_ref[...] + noise).astype(o_ref.dtype)


# ---------------------------------------------------------------------------
# Wrapper
# ---------------------------------------------------------------------------
_LANES = 128
_MAX_BLOCK_ROWS = 4096  # 4096 x 128 x 4B = 2 MiB per f32 block


def node_noise(x, *, loc=0.0, scale=1.0, training=True, seed=0):
    """Pallas implementation of NodeNoise.forward.

    x: any-shaped float array (e.g. NCHW activations).
    Note: `loc` cancels exactly in the Gumbel difference and has no effect,
    matching the math of the original module.
    """
    del loc  # cancels in G0 - G1
    if not training:
        return x

    orig_shape = x.shape
    n = x.size

    # Flatten to a lane-dense 2-D slab.  Pad only to a multiple of 128
    # (usually a no-op); the output is stored in the input dtype so bf16
    # activations keep bf16 HBM traffic.
    flat = x.reshape(-1)
    rem = (-n) % _LANES
    if rem:
        flat = jnp.pad(flat, (0, rem))
    rows = (n + rem) // _LANES
    x2d = flat.reshape(rows, _LANES)

    # Block size: full slab when small, otherwise 4096-row (2 MiB) blocks.
    # block_rows is either the full dim or a multiple of 8, so the (8,128)
    # BlockSpec constraint holds; a ragged last block is handled by Pallas.
    block_rows = rows if rows <= _MAX_BLOCK_ROWS else _MAX_BLOCK_ROWS
    grid = (pl.cdiv(rows, block_rows),)

    itemsize = jnp.dtype(x2d.dtype).itemsize

    if jax.default_backend() == "tpu":
        seed_arr = jnp.asarray([seed], dtype=jnp.int32)
        out2d = pl.pallas_call(
            functools.partial(_node_noise_tpu_kernel, scale=float(scale)),
            out_shape=jax.ShapeDtypeStruct((rows, _LANES), x2d.dtype),
            grid_spec=pltpu.PrefetchScalarGridSpec(
                num_scalar_prefetch=1,        # seed -> SMEM
                grid=grid,
                in_specs=[
                    pl.BlockSpec((block_rows, _LANES), lambda i, seed: (i, 0)),
                ],
                out_specs=pl.BlockSpec(
                    (block_rows, _LANES), lambda i, seed: (i, 0)),
            ),
            compiler_params=pltpu.CompilerParams(
                dimension_semantics=("parallel",)),  # 2 TCs on v7x
            cost_estimate=pl.CostEstimate(
                flops=6 * n,
                transcendentals=2 * n,
                bytes_accessed=2 * n * itemsize),
        )(seed_arr, x2d)
    else:
        # Portable fallback: the TPU hardware PRNG has no CPU/interpret
        # lowering, so draw the uniforms with jax.random and feed them in.
        key = jax.random.PRNGKey(seed)
        u2d = jax.random.uniform(
            key, (rows, _LANES), dtype=jnp.float32,
            minval=1e-7, maxval=1.0 - 1e-7)
        out2d = pl.pallas_call(
            functools.partial(_node_noise_portable_kernel, scale=float(scale)),
            out_shape=jax.ShapeDtypeStruct((rows, _LANES), x2d.dtype),
            grid=grid,
            in_specs=[
                pl.BlockSpec((block_rows, _LANES), lambda i: (i, 0)),
                pl.BlockSpec((block_rows, _LANES), lambda i: (i, 0)),
            ],
            out_specs=pl.BlockSpec((block_rows, _LANES), lambda i: (i, 0)),
        )(x2d, u2d)

    out = out2d.reshape(-1)
    if rem:
        out = out[:n]
    return out.reshape(orig_shape)


# ---------------------------------------------------------------------------
# Example / smoke test
# ---------------------------------------------------------------------------
if __name__ == "__main__":
    key = jax.random.PRNGKey(0)
    # Small NCHW activations: batch=2, channels=4, spatial=16x16.
    x = jax.random.normal(key, (2, 4, 16, 16), dtype=jnp.float32)

    # Training mode: additive logistic (Gumbel-difference) noise.
    y_train = node_noise(x, loc=0.0, scale=1.0, training=True, seed=1234)
    y_train = jax.block_until_ready(y_train)

    # Eval mode: identity.
    y_eval = node_noise(x, training=False)
    y_eval = jax.block_until_ready(y_eval)

    assert y_train.shape == x.shape and y_train.dtype == x.dtype
    assert bool(jnp.all(y_eval == x))
    # Noise must actually have been added in training mode, and be finite.
    assert not bool(jnp.allclose(y_train, x))
    assert bool(jnp.all(jnp.isfinite(y_train)))

    print("KERNEL_OK")
</pallas_src>

<mosaic_0001>
module attributes {stable_mosaic.version = 11 : i64} {
  func.func @_node_noise_portable_kernel(%arg0: i32, %arg1: memref<16x128xf32, #tpu.memory_space<vmem>>, %arg2: memref<16x128xf32, #tpu.memory_space<vmem>>, %arg3: memref<16x128xf32, #tpu.memory_space<vmem>>) attributes {dimension_semantics = [#tpu.dimension_semantics<arbitrary>], iteration_bounds = array<i64: 1>, scalar_prefetch = 0 : i64, scratch_operands = 0 : i64, tpu.core_type = #tpu.core_type<tc>, window_params = [{transform_indices = @transform_0, window_bounds = array<i64: 16, 128>}, {transform_indices = @transform_1, window_bounds = array<i64: 16, 128>}, {transform_indices = @transform_2, window_bounds = array<i64: 16, 128>}]} {
    %c0 = arith.constant 0 : index
    %c0_0 = arith.constant 0 : index
    %0 = vector.load %arg2[%c0, %c0_0] : memref<16x128xf32, #tpu.memory_space<vmem>>, vector<16x128xf32>
    %1 = math.log %0 : vector<16x128xf32>
    %cst = arith.constant 1.000000e+00 : f32
    %2 = vector.broadcast %cst : f32 to vector<16x128xf32>
    %3 = arith.subf %2, %0 : vector<16x128xf32>
    %4 = math.log %3 : vector<16x128xf32>
    %5 = arith.subf %1, %4 : vector<16x128xf32>
    %c0_1 = arith.constant 0 : index
    %c0_2 = arith.constant 0 : index
    %6 = vector.load %arg1[%c0_1, %c0_2] : memref<16x128xf32, #tpu.memory_space<vmem>>, vector<16x128xf32>
    %7 = arith.addf %6, %5 : vector<16x128xf32>
    %c0_3 = arith.constant 0 : index
    %c0_4 = arith.constant 0 : index
    %8 = vector.load %arg3[%c0_3, %c0_4] : memref<16x128xf32, #tpu.memory_space<vmem>>, vector<16x128xf32>
    tpu.vector_store %arg3[%c0_3, %c0_4], %7 {strides = array<i32>} : memref<16x128xf32, #tpu.memory_space<vmem>>, vector<16x128xf32>,
    return
  }
  func.func @transform_0(%arg0: i32) -> (i32, i32) {
    %c0_i32 = arith.constant 0 : i32
    %c0_i32_0 = arith.constant 0 : i32
    return %arg0, %c0_i32 : i32, i32
  }
  func.func @transform_1(%arg0: i32) -> (i32, i32) {
    %c0_i32 = arith.constant 0 : i32
    %c0_i32_0 = arith.constant 0 : i32
    return %arg0, %c0_i32 : i32, i32
  }
  func.func @transform_2(%arg0: i32) -> (i32, i32) {
    %c0_i32 = arith.constant 0 : i32
    %c0_i32_0 = arith.constant 0 : i32
    return %arg0, %c0_i32 : i32, i32
  }
}

</mosaic_0001>

<llo_original>
// kernel: tpu_custom_call.1
$region0: #{tpu_custom_call.1}
  #allocation0 [shape = 'u32[]', space=smem, size = 0x4, offset = 0x4, fixed_abs, tag = 'smem constant byte address 0x4 - core index']
  #allocation1 [shape = 'u32[72,128]{1,0:T(1,128)}', space=vmem, size = 0x9000, scoped, tag = 'internal scratch']
  %s0 = inlined_call_operand.hbm [shape: f32[16,128], index: 0, kind: input, shape index: {}]
  %s1 = inlined_call_operand.hbm [shape: f32[16,128], index: 1, kind: input, shape index: {}]
  %s2 = inlined_call_operand.hbm [shape: f32[16,128], index: 2, kind: output, shape index: {}]
  %s3 = sld [smem:[#allocation0]]
  $region26: #{tpu_custom_call.1} parent=0
    _
  %s5 = ssub.s32 1, %s3
  %s6 = scalar_select 0, %s5, %s3
  $region1: #{tpu_custom_call.1} parent=0
    #allocation2 [shape = 'u8[8192]{0}', space=vmem, size = 0x2000, scoped, tag = 'input window, operand 0, single buffered']
    #allocation3 [shape = 's32[1]{0}', space=sflag, size = 0x4, scoped, tag = 'scoped memory for tpu_custom_call.1']
    #allocation4 [shape = 's32[1]{0}', space=sflag, size = 0x4, scoped, tag = 'scoped memory for tpu_custom_call.1']
    #allocation5 [shape = 'u8[8192]{0}', space=vmem, size = 0x2000, scoped, tag = 'input window, operand 1, single buffered']
    #allocation6 [shape = 's32[1]{0}', space=sflag, size = 0x4, scoped, tag = 'scoped memory for tpu_custom_call.1']
    #allocation7 [shape = 'u8[8192]{0}', space=vmem, size = 0x2000, scoped, tag = 'output window, operand 0, single buffered']
    %7 = vsyncpa [#allocation3], 0
    %8 = vsyncpa [#allocation6], 0
    %9 = vsyncpa [#allocation4], 0
    // Predicated region
    $region2: #{tpu_custom_call.1} parent=1 // pred_check
      _
    $region3: #{tpu_custom_call.1} parent=1 // pred_check_branch
      %11 = sbr.rel (0) target = $region5
    $region4: #{tpu_custom_call.1} parent=1 // pred_region
      %13 = vsyncadd [#allocation3], 0
      %s14 = sshll.u32 %s0, 4
      %s15 = int_to_ptr.hbm [resolvable:$true] %s14
      %s16 = sshll.u32 [#allocation2], 4
      %s17 = int_to_ptr.vmem [resolvable:$true] %s16
      %22 = dma.hbm_to_vmem [thread:$0]  %s15, 256, %s17, [#allocation3], 128, 128, 8
    $region5: #{tpu_custom_call.1} parent=1 // pred_fallthru
      _
    // Predicated region
    $region6: #{tpu_custom_call.1} parent=1 // pred_check
      _
    $region7: #{tpu_custom_call.1} parent=1 // pred_check_branch
      %24 = sbr.rel (0) target = $region9
    $region8: #{tpu_custom_call.1} parent=1 // pred_region
      %26 = vsyncadd [#allocation6], 0
      %s27 = sshll.u32 %s1, 4
      %s28 = int_to_ptr.hbm [resolvable:$true] %s27
      %s29 = sshll.u32 [#allocation5], 4
      %s30 = int_to_ptr.vmem [resolvable:$true] %s29
      %35 = dma.hbm_to_vmem [thread:$0]  %s28, 256, %s30, [#allocation6], 128, 128, 8
    $region9: #{tpu_custom_call.1} parent=1 // pred_fallthru
      _
    // Predicated region
    $region10: #{tpu_custom_call.1} parent=1 // pred_check
      _
    $region11: #{tpu_custom_call.1} parent=1 // pred_check_branch
      %37 = sbr.rel (0) target = $region13
    $region12: #{tpu_custom_call.1} parent=1 // pred_region
      %39 = dma.done [#allocation3], 256
    $region13: #{tpu_custom_call.1} parent=1 // pred_fallthru
      _
    // Predicated region
    $region14: #{tpu_custom_call.1} parent=1 // pred_check
      _
    $region15: #{tpu_custom_call.1} parent=1 // pred_check_branch
      %41 = sbr.rel (0) target = $region17
    $region16: #{tpu_custom_call.1} parent=1 // pred_region
      %43 = dma.done [#allocation6], 256
    $region17: #{tpu_custom_call.1} parent=1 // pred_fallthru
      _
    %v44 = vld [vmem:[#allocation5] sm:$0xff]
    %v45 = vld [vmem:[#allocation5 + $0x8] sm:$0xff]
    %v46 = vlog2.pop %v44
    %v47 = vmul.f32 %v46, 0.6931472
    %v48 = vlog2.pop %v45
    %v49 = vmul.f32 %v48, 0.6931472
    %v50 = vsub.f32 1.0, %v44
    %v51 = vsub.f32 1.0, %v45
    %v52 = vlog2.pop %v50
    %v53 = vmul.f32 %v52, 0.6931472
    %v54 = vlog2.pop %v51
    %v55 = vmul.f32 %v54, 0.6931472
    %v56 = vsub.f32 %v47, %v53
    %v57 = vsub.f32 %v49, %v55
    %v58 = vld [vmem:[#allocation2] sm:$0xff]
    %v59 = vld [vmem:[#allocation2 + $0x8] sm:$0xff]
    %v60 = vadd.f32 %v58, %v56
    %v61 = vadd.f32 %v59, %v57
    %62 = vst [vmem:[#allocation7] sm:$0xff] %v60
    %63 = vst [vmem:[#allocation7 + $0x8] sm:$0xff] %v61
    // Predicated region
    $region18: #{tpu_custom_call.1} parent=1 // pred_check
      _
    $region19: #{tpu_custom_call.1} parent=1 // pred_check_branch
      %65 = sbr.rel (0) target = $region21
    $region20: #{tpu_custom_call.1} parent=1 // pred_region
      %67 = vsyncadd [#allocation4], 0
      %s68 = sshll.u32 [#allocation7], 4
      %s69 = int_to_ptr.vmem [resolvable:$true] %s68
      %s70 = sshll.u32 %s2, 4
      %s71 = int_to_ptr.hbm [resolvable:$true] %s70
      %76 = dma.vmem_to_hbm [thread:$0]  %s69, 256, %s71, [#allocation4], 128, 128, 8
    $region21: #{tpu_custom_call.1} parent=1 // pred_fallthru
      _
    // Predicated region
    $region22: #{tpu_custom_call.1} parent=1 // pred_check
      _
    $region23: #{tpu_custom_call.1} parent=1 // pred_check_branch
      %78 = sbr.rel (0) target = $region25
    $region24: #{tpu_custom_call.1} parent=1 // pred_region
      %80 = dma.done [#allocation4], 256
    $region25: #{tpu_custom_call.1} parent=1 // pred_fallthru
      _
    %81 = vsyncpa [#allocation3], 1
    %82 = vsyncpa [#allocation6], 1
    %83 = vsyncpa [#allocation4], 1

</llo_original>
